<compile_context>
chip_gen: v6e
topology: v6e:2x2x1
jax: 0.10.0
libtpu: 0.0.40
codegen_flags: <defaults>
</compile_context>

<pallas_src>
import functools

import jax
import jax.numpy as jnp
import numpy as np
from jax.experimental import pallas as pl
from jax.experimental.pallas import tpu as pltpu

_MiB = 1024 * 1024


def _round_up(x: int, m: int) -> int:
    return (x + m - 1) // m * m


def _ngcf_kernel(x_dst_ref, x_src_ref, a_ref, w_ref, b1_ref, bsum_ref,
                 o_ref, acc_ref, deg_ref, *, d_in_pad):
    """Grid = (dst_tiles, src_tiles). The src axis is the reduction axis."""
    k = pl.program_id(1)
    nk = pl.num_programs(1)

    @pl.when(k == 0)
    def _init():
        acc_ref[...] = jnp.zeros_like(acc_ref)
        deg_ref[...] = jnp.zeros_like(deg_ref)

    # --- per K-step work: only the aggregation matmul + deg rowsum ----------
    a = a_ref[...]                                          # (tm, tk) bf16
    acc_ref[...] += jnp.dot(a, x_src_ref[...],              # bf16 x bf16 -> f32
                            preferred_element_type=jnp.float32)
    deg_ref[...] += jnp.sum(a.astype(jnp.float32), axis=-1, keepdims=True)

    # --- finalize: W1/W2 dots, bias, LeakyReLU, (eval) dropout, L2 normalize
    @pl.when(k == nk - 1)
    def _finalize():
        agg = acc_ref[...]                                  # (tm, Din) f32
        xd = x_dst_ref[...].astype(jnp.float32)             # (tm, Din) f32
        m1 = (xd + agg).astype(jnp.bfloat16)                # W1 operand
        m2 = (agg * xd).astype(jnp.bfloat16)                # W2 operand
        h = jnp.dot(m1, w_ref[pl.ds(0, d_in_pad), :],
                    preferred_element_type=jnp.float32)
        h = h + jnp.dot(m2, w_ref[pl.ds(d_in_pad, d_in_pad), :],
                        preferred_element_type=jnp.float32)
        # (1+deg)*b1 + deg*b2 == b1 + deg*(b1+b2)
        h = h + b1_ref[...] + deg_ref[...] * bsum_ref[...]
        h = jnp.where(h > 0, h, 0.2 * h)                    # LeakyReLU(0.2)
        # dropout -> identity (eval semantics)
        sumsq = jnp.sum(h * h, axis=-1, keepdims=True)
        # F.normalize(p=2, eps=1e-12): h / max(||h||, 1e-12)
        h = h * jax.lax.rsqrt(jnp.maximum(sumsq, 1e-24))
        o_ref[...] = h.astype(o_ref.dtype)


def _vmem_estimate(tm, tk, d_in_pad, d_out_pad):
    """Double-buffered VMEM footprint estimate (bytes)."""
    return (
        2 * tm * tk * 2                       # A tile (bf16) x2
        + 2 * tk * d_in_pad * 2               # X_src tile (bf16) x2
        + 2 * tm * d_in_pad * 2               # X_dst tile (bf16) x2
        + 2 * 2 * d_in_pad * d_out_pad * 2    # fused W (bf16, resident) x2
        + 4 * 8 * d_out_pad * 4               # b1 / bsum (sublane-padded) x2
        + 2 * tm * d_out_pad * 4              # output tile (f32) x2
        + tm * d_in_pad * 4                   # fp32 agg accumulator scratch
        + tm * 128 * 4                        # fp32 deg scratch (lane-padded)
    )


def ngcf_one_ntype(x_dst, x_src, a_norm, w_fused, b1p, bsump, *,
                   d_out, tm=512, tk=4096):
    """Run the NGCF layer for one destination node type.

    x_dst: (N_dst, D_in)   x_src: (N_src, D_in)
    a_norm: (N_dst, N_src) normalized adjacency (row = dst)
    w_fused: (2*D_in_pad, D_out_pad) bf16 = [W1_pad; W2_pad] (pre-transposed)
    b1p:   (1, D_out_pad) f32      bsump: (1, D_out_pad) f32 = b1_pad + b2_pad
    """
    n_dst, d_in = x_dst.shape
    n_src = x_src.shape[0]
    d_in_pad = w_fused.shape[0] // 2
    d_out_pad = w_fused.shape[1]

    # ---- tile selection -----------------------------------------------------
    # tm: multiple of 16 (bf16 sublane packing); keep >=2 dst tiles when
    # possible so the "parallel" axis can shard across v7x's 2 TensorCores.
    n_dst_16 = _round_up(n_dst, 16)
    tm = min(tm, n_dst_16)
    if n_dst_16 >= 32:
        tm = min(tm, _round_up((n_dst_16 + 1) // 2, 16))
    tm = _round_up(tm, 16)
    # tk: multiple of 128 (lane dim of A, sublane dim of bf16 X_src).
    tk = _round_up(min(tk, _round_up(n_src, 128)), 128)

    # Per-generation VMEM budget (v7x has 64 MiB physical; v5e/v6e have 128).
    try:
        info = pltpu.get_tpu_info()
        vmem_cap = int(getattr(info, "vmem_capacity_bytes", 64 * _MiB))
    except Exception:  # interpret mode / older runtimes
        vmem_cap = 64 * _MiB
    vmem_budget = 40 * _MiB if vmem_cap <= 64 * _MiB else 96 * _MiB

    # Shrink tiles until the double-buffered estimate fits the budget.
    while _vmem_estimate(tm, tk, d_in_pad, d_out_pad) > vmem_budget and tk > 128:
        tk = max(128, _round_up(tk // 2, 128))
    while _vmem_estimate(tm, tk, d_in_pad, d_out_pad) > vmem_budget and tm > 16:
        tm = max(16, _round_up(tm // 2, 16))

    n_dst_pad = _round_up(n_dst, tm)
    n_src_pad = _round_up(n_src, tk)
    grid = (n_dst_pad // tm, n_src_pad // tk)

    # ---- pad inputs (zeros contribute nothing) and pick streaming dtypes ----
    x_dst_p = jnp.pad(x_dst, ((0, n_dst_pad - n_dst), (0, d_in_pad - d_in))
                      ).astype(jnp.bfloat16)
    x_src_p = jnp.pad(x_src, ((0, n_src_pad - n_src), (0, d_in_pad - d_in))
                      ).astype(jnp.bfloat16)
    a_p = jnp.pad(a_norm, ((0, n_dst_pad - n_dst), (0, n_src_pad - n_src))
                  ).astype(jnp.bfloat16)

    vmem_bytes = _vmem_estimate(tm, tk, d_in_pad, d_out_pad)
    vmem_limit = int(min(max(2 * vmem_bytes, 32 * _MiB), vmem_budget))

    flops = int(2 * n_dst_pad * n_src_pad * d_in_pad            # A @ X_src
                + 2 * 2 * n_dst_pad * d_in_pad * d_out_pad)     # finalize dots
    bytes_accessed = int(
        n_dst_pad * n_src_pad * 2                               # A (bf16)
        + grid[0] * n_src_pad * d_in_pad * 2                    # X_src re-stream
        + n_dst_pad * d_in_pad * 2                              # X_dst
        + 2 * d_in_pad * d_out_pad * 2                          # fused W
        + n_dst_pad * d_out_pad * 4)                            # output

    kernel = functools.partial(_ngcf_kernel, d_in_pad=d_in_pad)

    out_p = pl.pallas_call(
        kernel,
        out_shape=jax.ShapeDtypeStruct((n_dst_pad, d_out_pad), jnp.float32),
        grid_spec=pltpu.PrefetchScalarGridSpec(
            num_scalar_prefetch=0,
            grid=grid,
            in_specs=[
                pl.BlockSpec((tm, d_in_pad), lambda i, k: (i, 0)),   # X_dst
                pl.BlockSpec((tk, d_in_pad), lambda i, k: (k, 0)),   # X_src
                pl.BlockSpec((tm, tk), lambda i, k: (i, k)),         # A tile
                # Grid-invariant operands below (W/b): tiny at these dims; for
                # large Din/Dout consider pipeline_mode=pl.Buffered(1).
                pl.BlockSpec((2 * d_in_pad, d_out_pad), lambda i, k: (0, 0)),
                pl.BlockSpec((1, d_out_pad), lambda i, k: (0, 0)),   # b1
                pl.BlockSpec((1, d_out_pad), lambda i, k: (0, 0)),   # b1+b2
            ],
            out_specs=pl.BlockSpec((tm, d_out_pad), lambda i, k: (i, 0)),
            scratch_shapes=[pltpu.VMEM((tm, d_in_pad), jnp.float32),  # agg acc
                            pltpu.VMEM((tm, 1), jnp.float32)],        # deg acc
        ),
        compiler_params=pltpu.CompilerParams(
            dimension_semantics=("parallel", "arbitrary"),
            vmem_limit_bytes=vmem_limit,
        ),
        cost_estimate=pl.CostEstimate(
            flops=flops, transcendentals=int(n_dst_pad),
            bytes_accessed=bytes_accessed),
    )(x_dst_p, x_src_p, a_p, w_fused, b1p, bsump)

    return out_p[:n_dst, :d_out]


def ngcf_layer(feat_user, feat_item, a_iu_norm, a_ui_norm, params, *,
               tm=512, tk=4096):
    """feat_*: (N, D_in). a_iu_norm: (n_users, n_items) normalized adjacency;
    a_ui_norm: (n_items, n_users) -- second layout built ONCE by the caller."""
    w1, b1, w2, b2 = params            # w1/w2: (D_in, D_out) pre-transposed
    d_in, d_out = w1.shape
    d_in_pad = _round_up(d_in, 128)
    d_out_pad = _round_up(d_out, 128)

    # Fused, lane-padded bf16 weights: W = [W1_pad; W2_pad]; f32 biases, b1+b2.
    w1p = jnp.pad(w1, ((0, d_in_pad - d_in), (0, d_out_pad - d_out)))
    w2p = jnp.pad(w2, ((0, d_in_pad - d_in), (0, d_out_pad - d_out)))
    w_fused = jnp.concatenate([w1p, w2p], axis=0).astype(jnp.bfloat16)
    b1p = jnp.pad(b1, ((0, 0), (0, d_out_pad - d_out))).astype(jnp.float32)
    b2p = jnp.pad(b2, ((0, 0), (0, d_out_pad - d_out))).astype(jnp.float32)
    bsump = b1p + b2p

    h_user = ngcf_one_ntype(feat_user, feat_item, a_iu_norm,
                            w_fused, b1p, bsump, d_out=d_out, tm=tm, tk=tk)
    h_item = ngcf_one_ntype(feat_item, feat_user, a_ui_norm,
                            w_fused, b1p, bsump, d_out=d_out, tm=tm, tk=tk)
    return {"user": h_user, "item": h_item}


def _ref_one_ntype(x_dst, x_src, a_q, w1_q, b1, w2_q, b2):
    """Pure-JAX reference using the same bf16 quantization points as the kernel."""
    hp = jax.lax.Precision.HIGHEST
    x_src_q = x_src.astype(jnp.bfloat16).astype(jnp.float32)
    x_dst_q = x_dst.astype(jnp.bfloat16).astype(jnp.float32)
    agg = jnp.dot(a_q, x_src_q, precision=hp)
    deg = jnp.sum(a_q, axis=1, keepdims=True)
    m1 = (x_dst_q + agg).astype(jnp.bfloat16).astype(jnp.float32)
    m2 = (agg * x_dst_q).astype(jnp.bfloat16).astype(jnp.float32)
    h = jnp.dot(m1, w1_q, precision=hp) + jnp.dot(m2, w2_q, precision=hp)
    h = h + b1 + deg * (b1 + b2)
    h = jnp.where(h > 0, h, 0.2 * h)
    n = jnp.sqrt(jnp.sum(h * h, axis=1, keepdims=True))
    return h / jnp.maximum(n, 1e-12)


if __name__ == "__main__":
    key = jax.random.PRNGKey(0)
    n_users, n_items = 16, 24
    in_size, out_size = 32, 32

    k_w1, k_w2, k_xu, k_xi, k_adj = jax.random.split(key, 5)

    # Xavier-uniform weights (PyTorch W shape (out,in); stored transposed), zero biases.
    bound = float(np.sqrt(6.0 / (in_size + out_size)))
    w1 = jax.random.uniform(k_w1, (in_size, out_size), jnp.float32, -bound, bound)
    w2 = jax.random.uniform(k_w2, (in_size, out_size), jnp.float32, -bound, bound)
    b1 = jnp.zeros((1, out_size), jnp.float32)
    b2 = jnp.zeros((1, out_size), jnp.float32)

    # Node features.
    feat_user = jax.random.normal(k_xu, (n_users, in_size), jnp.float32)
    feat_item = jax.random.normal(k_xi, (n_items, in_size), jnp.float32)

    # Deterministic bipartite adjacency; every node has degree >= 1.
    adj = (jax.random.uniform(k_adj, (n_users, n_items)) < 0.3).astype(jnp.float32)
    adj = adj.at[jnp.arange(n_users), jnp.arange(n_users) % n_items].set(1.0)
    adj = adj.at[jnp.arange(n_items) % n_users, jnp.arange(n_items)].set(1.0)
    deg_u = adj.sum(axis=1)
    deg_i = adj.sum(axis=0)
    # norm_dict equivalent: per-edge 1/sqrt(deg_dst*deg_src), folded into dense A.
    a_iu_norm = adj / jnp.sqrt(deg_u[:, None] * deg_i[None, :])   # (n_users, n_items)
    a_ui_norm = jnp.asarray(a_iu_norm.T)                          # built ONCE, reused

    params = (w1, b1, w2, b2)
    out = ngcf_layer(feat_user, feat_item, a_iu_norm, a_ui_norm, params)
    jax.block_until_ready(out)

    # Pure-JAX reference at matching bf16 quantization points.
    a_iu_q = a_iu_norm.astype(jnp.bfloat16).astype(jnp.float32)
    a_ui_q = a_ui_norm.astype(jnp.bfloat16).astype(jnp.float32)
    w1_q = w1.astype(jnp.bfloat16).astype(jnp.float32)
    w2_q = w2.astype(jnp.bfloat16).astype(jnp.float32)
    ref_user = _ref_one_ntype(feat_user, feat_item, a_iu_q, w1_q, b1, w2_q, b2)
    ref_item = _ref_one_ntype(feat_item, feat_user, a_ui_q, w1_q, b1, w2_q, b2)

    np.testing.assert_allclose(np.asarray(out["user"]), np.asarray(ref_user),
                               rtol=1e-2, atol=1e-2)
    np.testing.assert_allclose(np.asarray(out["item"]), np.asarray(ref_item),
                               rtol=1e-2, atol=1e-2)

    print("KERNEL_OK")
</pallas_src>

<mosaic_0001>
module attributes {stable_mosaic.version = 11 : i64} {
  func.func @_ngcf_kernel(%arg0: i32, %arg1: i32, %arg2: memref<16x128xbf16, #tpu.memory_space<vmem>>, %arg3: memref<128x128xbf16, #tpu.memory_space<vmem>>, %arg4: memref<16x128xbf16, #tpu.memory_space<vmem>>, %arg5: memref<256x128xbf16, #tpu.memory_space<vmem>>, %arg6: memref<1x128xf32, #tpu.memory_space<vmem>>, %arg7: memref<1x128xf32, #tpu.memory_space<vmem>>, %arg8: memref<16x128xf32, #tpu.memory_space<vmem>>, %arg9: memref<16x128xf32, #tpu.memory_space<vmem>>, %arg10: memref<16x1xf32, #tpu.memory_space<vmem>>) attributes {dimension_semantics = [#tpu.dimension_semantics<parallel>, #tpu.dimension_semantics<arbitrary>], iteration_bounds = array<i64: 1, 1>, scalar_prefetch = 0 : i64, scratch_operands = 2 : i64, tpu.core_type = #tpu.core_type<tc>, window_params = [{transform_indices = @transform_0, window_bounds = array<i64: 16, 128>}, {transform_indices = @transform_1, window_bounds = array<i64: 128, 128>}, {transform_indices = @transform_2, window_bounds = array<i64: 16, 128>}, {pipeline_mode = #tpu.pipeline_mode<synchronous>, transform_indices = @transform_3, window_bounds = array<i64: 256, 128>}, {pipeline_mode = #tpu.pipeline_mode<synchronous>, transform_indices = @transform_4, window_bounds = array<i64: 1, 128>}, {pipeline_mode = #tpu.pipeline_mode<synchronous>, transform_indices = @transform_5, window_bounds = array<i64: 1, 128>}, {transform_indices = @transform_6, window_bounds = array<i64: 16, 128>}]} {
    %c0_i32 = arith.constant 0 : i32
    %0 = arith.cmpi eq, %arg1, %c0_i32 : i32
    %1 = arith.extui %0 : i1 to i32
    %c0_i32_0 = arith.constant 0 : i32
    %2 = arith.cmpi ne, %1, %c0_i32_0 : i32
    scf.if %2 {
      %cst_15 = arith.constant 0.000000e+00 : f32
      %18 = vector.broadcast %cst_15 : f32 to vector<16x128xf32>
      %c0_16 = arith.constant 0 : index
      %c0_17 = arith.constant 0 : index
      %19 = vector.load %arg9[%c0_16, %c0_17] : memref<16x128xf32, #tpu.memory_space<vmem>>, vector<16x128xf32>
      tpu.vector_store %arg9[%c0_16, %c0_17], %18 {strides = array<i32>} : memref<16x128xf32, #tpu.memory_space<vmem>>, vector<16x128xf32>,
      %cst_18 = arith.constant 0.000000e+00 : f32
      %20 = vector.broadcast %cst_18 : f32 to vector<16x1xf32>
      %c0_19 = arith.constant 0 : index
      %c0_20 = arith.constant 0 : index
      %21 = vector.load %arg10[%c0_19, %c0_20] : memref<16x1xf32, #tpu.memory_space<vmem>>, vector<16x1xf32>
      tpu.vector_store %arg10[%c0_19, %c0_20], %20 {strides = array<i32>} : memref<16x1xf32, #tpu.memory_space<vmem>>, vector<16x1xf32>,
    } else {
    }
    %c0 = arith.constant 0 : index
    %c0_1 = arith.constant 0 : index
    %3 = vector.load %arg4[%c0, %c0_1] : memref<16x128xbf16, #tpu.memory_space<vmem>>, vector<16x128xbf16>
    %c0_2 = arith.constant 0 : index
    %c0_3 = arith.constant 0 : index
    %4 = vector.load %arg9[%c0_2, %c0_3] : memref<16x128xf32, #tpu.memory_space<vmem>>, vector<16x128xf32>
    %c0_4 = arith.constant 0 : index
    %c0_5 = arith.constant 0 : index
    %5 = vector.load %arg3[%c0_4, %c0_5] : memref<128x128xbf16, #tpu.memory_space<vmem>>, vector<128x128xbf16>
    %cst = arith.constant dense<0.000000e+00> : vector<16x128xf32>
    %6 = tpu.matmul %3, %5, %cst {dimension_numbers = #tpu.dot_dimension_numbers<[1], [0], [0], [1], [0, 0, 1, 1], [], []>} : vector<16x128xbf16>, vector<128x128xbf16>, vector<16x128xf32> -> vector<16x128xf32>
    %7 = arith.addf %4, %6 : vector<16x128xf32>
    %c0_6 = arith.constant 0 : index
    %c0_7 = arith.constant 0 : index
    %8 = vector.load %arg9[%c0_6, %c0_7] : memref<16x128xf32, #tpu.memory_space<vmem>>, vector<16x128xf32>
    tpu.vector_store %arg9[%c0_6, %c0_7], %7 {strides = array<i32>} : memref<16x128xf32, #tpu.memory_space<vmem>>, vector<16x128xf32>,
    %c0_8 = arith.constant 0 : index
    %c0_9 = arith.constant 0 : index
    %9 = vector.load %arg10[%c0_8, %c0_9] : memref<16x1xf32, #tpu.memory_space<vmem>>, vector<16x1xf32>
    %10 = arith.extf %3 : vector<16x128xbf16> to vector<16x128xf32>
    %cst_10 = arith.constant dense<0.000000e+00> : vector<16xf32>
    %11 = vector.multi_reduction <add>, %10, %cst_10 [1] : vector<16x128xf32> to vector<16xf32>
    %12 = vector.shape_cast %11 : vector<16xf32> to vector<16x1xf32>
    %13 = arith.addf %9, %12 : vector<16x1xf32>
    %c0_11 = arith.constant 0 : index
    %c0_12 = arith.constant 0 : index
    %14 = vector.load %arg10[%c0_11, %c0_12] : memref<16x1xf32, #tpu.memory_space<vmem>>, vector<16x1xf32>
    tpu.vector_store %arg10[%c0_11, %c0_12], %13 {strides = array<i32>} : memref<16x1xf32, #tpu.memory_space<vmem>>, vector<16x1xf32>,
    %c0_i32_13 = arith.constant 0 : i32
    %15 = arith.cmpi eq, %arg1, %c0_i32_13 : i32
    %16 = arith.extui %15 : i1 to i32
    %c0_i32_14 = arith.constant 0 : i32
    %17 = arith.cmpi ne, %16, %c0_i32_14 : i32
    scf.if %17 {
      %c0_15 = arith.constant 0 : index
      %c0_16 = arith.constant 0 : index
      %18 = vector.load %arg9[%c0_15, %c0_16] : memref<16x128xf32, #tpu.memory_space<vmem>>, vector<16x128xf32>
      %c0_17 = arith.constant 0 : index
      %c0_18 = arith.constant 0 : index
      %19 = vector.load %arg2[%c0_17, %c0_18] : memref<16x128xbf16, #tpu.memory_space<vmem>>, vector<16x128xbf16>
      %20 = arith.extf %19 : vector<16x128xbf16> to vector<16x128xf32>
      %21 = arith.addf %20, %18 : vector<16x128xf32>
      %22 = arith.truncf %21 : vector<16x128xf32> to vector<16x128xbf16>
      %23 = arith.mulf %18, %20 : vector<16x128xf32>
      %24 = arith.truncf %23 : vector<16x128xf32> to vector<16x128xbf16>
      %c0_19 = arith.constant 0 : index
      %c0_20 = arith.constant 0 : index
      %25 = vector.load %arg5[%c0_19, %c0_20] : memref<256x128xbf16, #tpu.memory_space<vmem>>, vector<128x128xbf16>
      %cst_21 = arith.constant dense<0.000000e+00> : vector<16x128xf32>
      %26 = tpu.matmul %22, %25, %cst_21 {dimension_numbers = #tpu.dot_dimension_numbers<[1], [0], [0], [1], [0, 0, 1, 1], [], []>} : vector<16x128xbf16>, vector<128x128xbf16>, vector<16x128xf32> -> vector<16x128xf32>
      %c128 = arith.constant 128 : index
      %c0_22 = arith.constant 0 : index
      %27 = vector.load %arg5[%c128, %c0_22] : memref<256x128xbf16, #tpu.memory_space<vmem>>, vector<128x128xbf16>
      %cst_23 = arith.constant dense<0.000000e+00> : vector<16x128xf32>
      %28 = tpu.matmul %24, %27, %cst_23 {dimension_numbers = #tpu.dot_dimension_numbers<[1], [0], [0], [1], [0, 0, 1, 1], [], []>} : vector<16x128xbf16>, vector<128x128xbf16>, vector<16x128xf32> -> vector<16x128xf32>
      %29 = arith.addf %26, %28 : vector<16x128xf32>
      %c0_24 = arith.constant 0 : index
      %c0_25 = arith.constant 0 : index
      %30 = vector.load %arg6[%c0_24, %c0_25] : memref<1x128xf32, #tpu.memory_space<vmem>>, vector<1x128xf32>
      %31 = vector.broadcast %30 : vector<1x128xf32> to vector<16x128xf32>
      %32 = arith.addf %29, %31 : vector<16x128xf32>
      %c0_26 = arith.constant 0 : index
      %c0_27 = arith.constant 0 : index
      %33 = vector.load %arg10[%c0_26, %c0_27] : memref<16x1xf32, #tpu.memory_space<vmem>>, vector<16x1xf32>
      %c0_28 = arith.constant 0 : index
      %c0_29 = arith.constant 0 : index
      %34 = vector.load %arg7[%c0_28, %c0_29] : memref<1x128xf32, #tpu.memory_space<vmem>>, vector<1x128xf32>
      %35 = vector.broadcast %33 : vector<16x1xf32> to vector<16x128xf32>
      %36 = vector.broadcast %34 : vector<1x128xf32> to vector<16x128xf32>
      %37 = arith.mulf %35, %36 : vector<16x128xf32>
      %38 = arith.addf %32, %37 : vector<16x128xf32>
      %cst_30 = arith.constant 0.000000e+00 : f32
      %39 = vector.broadcast %cst_30 : f32 to vector<16x128xf32>
      %40 = arith.cmpf ogt, %38, %39 : vector<16x128xf32>
      %cst_31 = arith.constant 2.000000e-01 : f32
      %41 = vector.broadcast %cst_31 : f32 to vector<16x128xf32>
      %42 = arith.mulf %41, %38 : vector<16x128xf32>
      %43 = arith.select %40, %38, %42 : vector<16x128xi1>, vector<16x128xf32>
      %44 = arith.mulf %43, %43 : vector<16x128xf32>
      %cst_32 = arith.constant dense<0.000000e+00> : vector<16xf32>
      %45 = vector.multi_reduction <add>, %44, %cst_32 [1] : vector<16x128xf32> to vector<16xf32>
      %46 = vector.shape_cast %45 : vector<16xf32> to vector<16x1xf32>
      %cst_33 = arith.constant 1.000000e-24 : f32
      %47 = vector.broadcast %cst_33 : f32 to vector<16x1xf32>
      %48 = arith.maximumf %46, %47 : vector<16x1xf32>
      %49 = math.rsqrt %48 : vector<16x1xf32>
      %50 = vector.broadcast %49 : vector<16x1xf32> to vector<16x128xf32>
      %51 = arith.mulf %43, %50 : vector<16x128xf32>
      %c0_34 = arith.constant 0 : index
      %c0_35 = arith.constant 0 : index
      %52 = vector.load %arg8[%c0_34, %c0_35] : memref<16x128xf32, #tpu.memory_space<vmem>>, vector<16x128xf32>
      tpu.vector_store %arg8[%c0_34, %c0_35], %51 {strides = array<i32>} : memref<16x128xf32, #tpu.memory_space<vmem>>, vector<16x128xf32>,
    } else {
    }
    return
  }
  func.func @transform_0(%arg0: i32, %arg1: i32) -> (i32, i32) {
    %c0_i32 = arith.constant 0 : i32
    %c0_i32_0 = arith.constant 0 : i32
    return %arg0, %c0_i32 : i32, i32
  }
  func.func @transform_1(%arg0: i32, %arg1: i32) -> (i32, i32) {
    %c0_i32 = arith.constant 0 : i32
    %c0_i32_0 = arith.constant 0 : i32
    return %arg1, %c0_i32 : i32, i32
  }
  func.func @transform_2(%arg0: i32, %arg1: i32) -> (i32, i32) {
    %c0_i32 = arith.constant 0 : i32
    return %arg0, %arg1 : i32, i32
  }
  func.func @transform_3(%arg0: i32, %arg1: i32) -> (i32, i32) {
    %c0_i32 = arith.constant 0 : i32
    %c0_i32_0 = arith.constant 0 : i32
    %c0_i32_1 = arith.constant 0 : i32
    return %c0_i32, %c0_i32_0 : i32, i32
  }
  func.func @transform_4(%arg0: i32, %arg1: i32) -> (i32, i32) {
    %c0_i32 = arith.constant 0 : i32
    %c0_i32_0 = arith.constant 0 : i32
    %c0_i32_1 = arith.constant 0 : i32
    return %c0_i32, %c0_i32_0 : i32, i32
  }
  func.func @transform_5(%arg0: i32, %arg1: i32) -> (i32, i32) {
    %c0_i32 = arith.constant 0 : i32
    %c0_i32_0 = arith.constant 0 : i32
    %c0_i32_1 = arith.constant 0 : i32
    return %c0_i32, %c0_i32_0 : i32, i32
  }
  func.func @transform_6(%arg0: i32, %arg1: i32) -> (i32, i32) {
    %c0_i32 = arith.constant 0 : i32
    %c0_i32_0 = arith.constant 0 : i32
    return %arg0, %c0_i32 : i32, i32
  }
}

</mosaic_0001>

<llo_original>
// kernel: tpu_custom_call.1
$region0: #{tpu_custom_call.1}
  #allocation0 [shape = 'u32[]', space=smem, size = 0x4, offset = 0x4, fixed_abs, tag = 'smem constant byte address 0x4 - core index']
  #allocation1 [shape = 'u32[144,128]{1,0:T(1,128)}', space=vmem, size = 0x12000, scoped, tag = 'internal scratch']
  #allocation2 [shape = 'f32[16,128]{1,0:T(8,128)}', space=vmem, size = 0x2000, scoped, tag = 'scratch operand']
  #allocation3 [shape = 'f32[16,1]{1,0:T(8,128)}', space=vmem, size = 0x2000, scoped, tag = 'scratch operand']
  %s0 = inlined_call_operand.hbm [shape: bf16[16,128], index: 0, kind: input, shape index: {}]
  %s1 = inlined_call_operand.hbm [shape: bf16[128,128], index: 1, kind: input, shape index: {}]
  %s2 = inlined_call_operand.hbm [shape: bf16[16,128], index: 2, kind: input, shape index: {}]
  %s3 = inlined_call_operand.hbm [shape: bf16[256,128], index: 3, kind: input, shape index: {}]
  %s4 = inlined_call_operand.vmem [shape: f32[1,128], index: 4, kind: input, shape index: {}]
  %s5 = inlined_call_operand.vmem [shape: f32[1,128], index: 5, kind: input, shape index: {}]
  %s6 = inlined_call_operand.hbm [shape: f32[16,128], index: 6, kind: output, shape index: {}]
  %s7 = sld [smem:[#allocation0]]
  $region58: #{tpu_custom_call.1} parent=0
    _
  %s9 = ssub.s32 1, %s7
  %s10 = scalar_select 0, %s9, %s7
  $region1: #{tpu_custom_call.1} parent=0
    #allocation4 [shape = 'u8[4096]{0}', space=vmem, size = 0x1000, scoped, tag = 'input window, operand 0, single buffered']
    #allocation5 [shape = 's32[1]{0}', space=sflag, size = 0x4, scoped, tag = 'scoped memory for tpu_custom_call.1']
    #allocation6 [shape = 's32[1]{0}', space=sflag, size = 0x4, scoped, tag = 'scoped memory for tpu_custom_call.1']
    #allocation7 [shape = 'u8[32768]{0}', space=vmem, size = 0x8000, scoped, tag = 'input window, operand 1, single buffered']
    #allocation8 [shape = 's32[1]{0}', space=sflag, size = 0x4, scoped, tag = 'scoped memory for tpu_custom_call.1']
    #allocation9 [shape = 'u8[4096]{0}', space=vmem, size = 0x1000, scoped, tag = 'input window, operand 2, single buffered']
    #allocation10 [shape = 'u8[65536]{0}', space=vmem, size = 0x10000, scoped, tag = 'input window, operand 3, single buffered']
    #allocation11 [shape = 's32[1]{0}', space=sflag, size = 0x4, scoped, tag = 'scoped memory for tpu_custom_call.1']
    #allocation12 [shape = 'u8[8192]{0}', space=vmem, size = 0x2000, scoped, tag = 'output window, operand 0, single buffered']
    %11 = vsyncpa [#allocation5], 0
    %12 = vsyncpa [#allocation8], 0
    %13 = vsyncpa [#allocation11], 0
    %14 = vsyncpa [#allocation6], 0
    // Predicated region
    $region2: #{tpu_custom_call.1} parent=1 // pred_check
      _
    $region3: #{tpu_custom_call.1} parent=1 // pred_check_branch
      %16 = sbr.rel (0) target = $region5
    $region4: #{tpu_custom_call.1} parent=1 // pred_region
      %s18 = ssub.s32 128, 128
      %19 = vsyncadd [#allocation5], %s18
      %s20 = sshll.u32 [#allocation4], 4
      %s21 = int_to_ptr.vmem [resolvable:$true] %s20
      %26 = dma.hbm_to_vmem [thread:$0]  %s0, 128, %s21, [#allocation5], 64, 64, 4
    $region5: #{tpu_custom_call.1} parent=1 // pred_fallthru
      _
    // Predicated region
    $region6: #{tpu_custom_call.1} parent=1 // pred_check
      _
    $region7: #{tpu_custom_call.1} parent=1 // pred_check_branch
      %28 = sbr.rel (0) target = $region9
    $region8: #{tpu_custom_call.1} parent=1 // pred_region
      %s30 = ssub.s32 1024, 1024
      %31 = vsyncadd [#allocation8], %s30
      %s32 = sshll.u32 [#allocation7], 4
      %s33 = int_to_ptr.vmem [resolvable:$true] %s32
      %38 = dma.hbm_to_vmem [thread:$0]  %s1, 1024, %s33, [#allocation8], 64, 64, 4
    $region9: #{tpu_custom_call.1} parent=1 // pred_fallthru
      _
    // Predicated region
    $region10: #{tpu_custom_call.1} parent=1 // pred_check
      _
    $region11: #{tpu_custom_call.1} parent=1 // pred_check_branch
      %40 = sbr.rel (0) target = $region13
    $region12: #{tpu_custom_call.1} parent=1 // pred_region
      %s42 = ssub.s32 128, 128
      %43 = vsyncadd [#allocation8], %s42
      %s44 = sshll.u32 [#allocation9], 4
      %s45 = int_to_ptr.vmem [resolvable:$true] %s44
      %50 = dma.hbm_to_vmem [thread:$0]  %s2, 128, %s45, [#allocation8], 64, 64, 4
    $region13: #{tpu_custom_call.1} parent=1 // pred_fallthru
      _
    // Predicated region
    $region14: #{tpu_custom_call.1} parent=1 // pred_check
      _
    $region15: #{tpu_custom_call.1} parent=1 // pred_check_branch
      %52 = sbr.rel (0) target = $region17
    $region16: #{tpu_custom_call.1} parent=1 // pred_region
      %s54 = ssub.s32 2048, 2048
      %55 = vsyncadd [#allocation11], %s54
      %s56 = sshll.u32 [#allocation10], 4
      %s57 = int_to_ptr.vmem [resolvable:$true] %s56
      %62 = dma.hbm_to_vmem [thread:$0]  %s3, 2048, %s57, [#allocation11], 64, 64, 4
    $region17: #{tpu_custom_call.1} parent=1 // pred_fallthru
      _
    // Predicated region
    $region18: #{tpu_custom_call.1} parent=1 // pred_check
      _
    $region19: #{tpu_custom_call.1} parent=1 // pred_check_branch
      %64 = sbr.rel (0) target = $region21
    $region20: #{tpu_custom_call.1} parent=1 // pred_region
      _
    $region21: #{tpu_custom_call.1} parent=1 // pred_fallthru
      _
    // Predicated region
    $region22: #{tpu_custom_call.1} parent=1 // pred_check
      _
    $region23: #{tpu_custom_call.1} parent=1 // pred_check_branch
      %66 = sbr.rel (0) target = $region25
    $region24: #{tpu_custom_call.1} parent=1 // pred_region
      _
    $region25: #{tpu_custom_call.1} parent=1 // pred_fallthru
      _
    // Predicated region
    $region26: #{tpu_custom_call.1} parent=1 // pred_check
      _
    $region27: #{tpu_custom_call.1} parent=1 // pred_check_branch
      %68 = sbr.rel (0) target = $region29
    $region28: #{tpu_custom_call.1} parent=1 // pred_region
      %69 = dma.done [#allocation5], 128
    $region29: #{tpu_custom_call.1} parent=1 // pred_fallthru
      _
    // Predicated region
    $region30: #{tpu_custom_call.1} parent=1 // pred_check
      _
    $region31: #{tpu_custom_call.1} parent=1 // pred_check_branch
      %71 = sbr.rel (0) target = $region33
    $region32: #{tpu_custom_call.1} parent=1 // pred_region
      %72 = dma.done [#allocation8], 1024
    $region33: #{tpu_custom_call.1} parent=1 // pred_fallthru
      _
    // Predicated region
    $region34: #{tpu_custom_call.1} parent=1 // pred_check
      _
    $region35: #{tpu_custom_call.1} parent=1 // pred_check_branch
      %74 = sbr.rel (0) target = $region37
    $region36: #{tpu_custom_call.1} parent=1 // pred_region
      %75 = dma.done [#allocation8], 128
    $region37: #{tpu_custom_call.1} parent=1 // pred_fallthru
      _
    // Predicated region
    $region38: #{tpu_custom_call.1} parent=1 // pred_check
      _
    $region39: #{tpu_custom_call.1} parent=1 // pred_check_branch
      %77 = sbr.rel (0) target = $region41
    $region40: #{tpu_custom_call.1} parent=1 // pred_region
      %78 = dma.done [#allocation11], 2048
    $region41: #{tpu_custom_call.1} parent=1 // pred_fallthru
      _
    %p80 = scmp.eq.s32.totalorder 0, 0
    // Predicated region
    $region42: #{tpu_custom_call.1} parent=1 // pred_check
      %p81 = pneg %p80
    $region43: #{tpu_custom_call.1} parent=1 // pred_check_branch
      %83 = sbr.rel (%p81) target = $region45
    $region44: #{tpu_custom_call.1} parent=1 // pred_region
      %84 = vst [vmem:[#allocation2] sm:$0xff] 0.0
      %85 = vst [vmem:[#allocation2 + $0x8] sm:$0xff] 0.0
      %vm86 = vcmask 7168
      %87 = vst.msk [vmem:[#allocation3] sm:$0xff] %vm86, 0.0
      %88 = vst.msk [vmem:[#allocation3 + $0x8] sm:$0xff] %vm86, 0.0
    $region45: #{tpu_custom_call.1} parent=1 // pred_fallthru
      _
    %v89 = vld [vmem:[#allocation9] sm:$0xf]
    %v90 = vld [vmem:[#allocation9 + $0x4] sm:$0xf]
    %v91 = vld [vmem:[#allocation2] sm:$0xff]
    %v92 = vld [vmem:[#allocation2 + $0x8] sm:$0xff]
    %v93 = vld [vmem:[#allocation7] sm:$0xf]
    %v94 = vld [vmem:[#allocation7 + $0x4] sm:$0xf]
    %v95 = vld [vmem:[#allocation7 + $0x8] sm:$0xf]
    %v96 = vld [vmem:[#allocation7 + $0xc] sm:$0xf]
    %v97 = vld [vmem:[#allocation7 + $0x10] sm:$0xf]
    %v98 = vld [vmem:[#allocation7 + $0x14] sm:$0xf]
    %v99 = vld [vmem:[#allocation7 + $0x18] sm:$0xf]
    %v100 = vld [vmem:[#allocation7 + $0x1c] sm:$0xf]
    %v101 = vld [vmem:[#allocation7 + $0x20] sm:$0xf]
    %v102 = vld [vmem:[#allocation7 + $0x24] sm:$0xf]
    %v103 = vld [vmem:[#allocation7 + $0x28] sm:$0xf]
    %v104 = vld [vmem:[#allocation7 + $0x2c] sm:$0xf]
    %v105 = vld [vmem:[#allocation7 + $0x30] sm:$0xf]
    %v106 = vld [vmem:[#allocation7 + $0x34] sm:$0xf]
    %v107 = vld [vmem:[#allocation7 + $0x38] sm:$0xf]
    %v108 = vld [vmem:[#allocation7 + $0x3c] sm:$0xf]
    %v111 = vunpack.c.l.b16 %v89
    %v112 = vunpack.c.l.b16 %v90
    %v113 = vpack.c.b16 %v112, %v111
    %v131 = vunpack.c.l.b16 %v93
    %v132 = vunpack.c.l.b16 %v94
    %v133 = vunpack.c.l.b16 %v95
    %v134 = vunpack.c.l.b16 %v96
    %v135 = vunpack.c.l.b16 %v97
    %v136 = vunpack.c.l.b16 %v98
    %v137 = vunpack.c.l.b16 %v99
    %v138 = vunpack.c.l.b16 %v100
    %v139 = vunpack.c.l.b16 %v101
    %v140 = vunpack.c.l.b16 %v102
    %v141 = vunpack.c.l.b16 %v103
    %v142 = vunpack.c.l.b16 %v104
    %v143 = vunpack.c.l.b16 %v105
    %v144 = vunpack.c.l.b16 %v106
    %v145 = vunpack.c.l.b16 %v107
    %v146 = vunpack.c.l.b16 %v108
    %v147 = vpack.c.b16 %v132, %v131
    %v148 = vpack.c.b16 %v134, %v133
    %v149 = vpack.c.b16 %v136, %v135
    %v150 = vpack.c.b16 %v138, %v137
    %v151 = vpack.c.b16 %v140, %v139
    %v152 = vpack.c.b16 %v142, %v141
    %v153 = vpack.c.b16 %v144, %v143
    %v154 = vpack.c.b16 %v146, %v145
    %163 = vmatprep.subr.bf16.mxu0 0
    %164 = vmatpush1.bf16.msra.mxu0 %v154
    %165 = vmatprep.subr.bf16.mxu0 0
    %166 = vmatpush1.bf16.msra.mxu0 %v153
    %167 = vmatprep.subr.bf16.mxu0 0
    %168 = vmatpush1.bf16.msra.mxu0 %v152
    %169 = vmatprep.subr.bf16.mxu0 0
    %170 = vmatpush1.bf16.msra.mxu0 %v151
    %171 = vmatprep.subr.bf16.mxu0 0
    %172 = vmatpush1.bf16.msra.mxu0 %v150
    %173 = vmatprep.subr.bf16.mxu0 0
    %174 = vmatpush1.bf16.msra.mxu0 %v149
    %175 = vmatprep.subr.bf16.mxu0 0
    %176 = vmatpush1.bf16.msra.mxu0 %v148
    %177 = vmatprep.subr.bf16.mxu0 0
    %178 = vmatpush1.bf16.msra.mxu0 %v147
    %179 = vmatprep.subr.bf16.mxu0 0
    %180 = vmatpush2.bf16.msra.mxu0 0
    %181 = vmatprep.subr.bf16.mxu0 0
    %182 = vmatpush2.bf16.msra.mxu0 0
    %183 = vmatprep.subr.bf16.mxu0 0
    %184 = vmatpush2.bf16.msra.mxu0 0
    %185 = vmatprep.subr.bf16.mxu0 0
    %186 = vmatpush2.bf16.msra.mxu0 0
    %187 = vmatprep.subr.bf16.mxu0 0
    %188 = vmatpush2.bf16.msra.mxu0 0
    %189 = vmatprep.subr.bf16.mxu0 0
    %190 = vmatpush2.bf16.msra.mxu0 0
    %191 = vmatprep.subr.bf16.mxu0 0
    %192 = vmatpush2.bf16.msra.mxu0 0
    %193 = vmatprep.subr.bf16.mxu0 0
    %194 = vmatpush2.bf16.msra.mxu0 0
    %195 = vmatprep.mubr.bf16.mxu0 0
    %196 = vmatmul.mubr.bf16.gmra.mxu0 %v113
    %v197 = vpop.f32.mrf.mxu0
    %v198 = vadd.f32 0.0, %v197
    %v199 = vpop.f32.mrf.mxu0
    %v200 = vpop.f32.mrf.mxu0
    %v201 = vadd.f32 0.0, %v200
    %v202 = vpop.f32.mrf.mxu0
    %203 = vdwg.mxu0
    %v204 = vadd.f32 %v91, %v198
    %v205 = vadd.f32 %v92, %v201
    %206 = vst [vmem:[#allocation2] sm:$0xff] %v204
    %207 = vst [vmem:[#allocation2 + $0x8] sm:$0xff] %v205
    %v208 = vld [vmem:[#allocation3] sm:$0xff]
    %v209 = vld [vmem:[#allocation3 + $0x8] sm:$0xff]
    %v210 = vunpack.c.l.bf16 %v89
    %v211 = vunpack.c.l.bf16 %v90
    %212 = vadd.xlane.f32.xlu0 %v210
    %v213 = vpop.xlane.xlu0 %212
    %214 = vadd.xlane.f32.xlu0 %v211
    %v215 = vpop.xlane.xlu0 %214
    %v216 = vadd.f32 %v208, %v213
    %v217 = vadd.f32 %v209, %v215
    %vm218 = vcmask 7168
    %219 = vst.msk [vmem:[#allocation3] sm:$0xff] %vm218, %v216
    %220 = vst.msk [vmem:[#allocation3 + $0x8] sm:$0xff] %vm218, %v217
    // Predicated region
    $region46: #{tpu_custom_call.1} parent=1 // pred_check
      %p221 = pneg %p80
    $region47: #{tpu_custom_call.1} parent=1 // pred_check_branch
      %223 = sbr.rel (%p221) target = $region49
    $region48: #{tpu_custom_call.1} parent=1 // pred_region
      %v224 = vld [vmem:[#allocation2] sm:$0xff]
      %v225 = vld [vmem:[#allocation2 + $0x8] sm:$0xff]
      %v226 = vld [vmem:[#allocation4] sm:$0xf]
      %v227 = vld [vmem:[#allocation4 + $0x4] sm:$0xf]
      %v228 = vunpack.c.l.bf16 %v226
      %v229 = vunpack.c.l.bf16 %v227
      %v230 = vadd.f32 %v228, %v224
      %v231 = vadd.f32 %v229, %v225
      %v232 = vpack.c.bf16 %v231, %v230
      %v233 = vmul.f32 %v224, %v228
      %v234 = vmul.f32 %v225, %v229
      %v235 = vpack.c.bf16 %v234, %v233
      %v236 = vld [vmem:[#allocation10] sm:$0xf]
      %v237 = vld [vmem:[#allocation10 + $0x4] sm:$0xf]
      %v238 = vld [vmem:[#allocation10 + $0x8] sm:$0xf]
      %v239 = vld [vmem:[#allocation10 + $0xc] sm:$0xf]
      %v240 = vld [vmem:[#allocation10 + $0x10] sm:$0xf]
      %v241 = vld [vmem:[#allocation10 + $0x14] sm:$0xf]
      %v242 = vld [vmem:[#allocation10 + $0x18] sm:$0xf]
      %v243 = vld [vmem:[#allocation10 + $0x1c] sm:$0xf]
      %v244 = vld [vmem:[#allocation10 + $0x20] sm:$0xf]
      %v245 = vld [vmem:[#allocation10 + $0x24] sm:$0xf]
      %v246 = vld [vmem:[#allocation10 + $0x28] sm:$0xf]
      %v247 = vld [vmem:[#allocation10 + $0x2c] sm:$0xf]
      %v248 = vld [vmem:[#allocation10 + $0x30] sm:$0xf]
      %v249 = vld [vmem:[#allocation10 + $0x34] sm:$0xf]
      %v250 = vld [vmem:[#allocation10 + $0x38] sm:$0xf]
      %v251 = vld [vmem:[#allocation10 + $0x3c] sm:$0xf]
      %v252 = vld [vmem:[#allocation10 + $0x40] sm:$0xf]
      %v253 = vld [vmem:[#allocation10 + $0x44] sm:$0xf]
      %v254 = vld [vmem:[#allocation10 + $0x48] sm:$0xf]
      %v255 = vld [vmem:[#allocation10 + $0x4c] sm:$0xf]
      %v256 = vld [vmem:[#allocation10 + $0x50] sm:$0xf]
      %v257 = vld [vmem:[#allocation10 + $0x54] sm:$0xf]
      %v258 = vld [vmem:[#allocation10 + $0x58] sm:$0xf]
      %v259 = vld [vmem:[#allocation10 + $0x5c] sm:$0xf]
      %v260 = vld [vmem:[#allocation10 + $0x60] sm:$0xf]
      %v261 = vld [vmem:[#allocation10 + $0x64] sm:$0xf]
      %v262 = vld [vmem:[#allocation10 + $0x68] sm:$0xf]
      %v263 = vld [vmem:[#allocation10 + $0x6c] sm:$0xf]
      %v264 = vld [vmem:[#allocation10 + $0x70] sm:$0xf]
      %v265 = vld [vmem:[#allocation10 + $0x74] sm:$0xf]
      %v266 = vld [vmem:[#allocation10 + $0x78] sm:$0xf]
      %v267 = vld [vmem:[#allocation10 + $0x7c] sm:$0xf]
      %v284 = vunpack.c.l.b16 %v252
      %v285 = vunpack.c.l.b16 %v253
      %v286 = vunpack.c.l.b16 %v254
      %v287 = vunpack.c.l.b16 %v255
      %v288 = vunpack.c.l.b16 %v256
      %v289 = vunpack.c.l.b16 %v257
      %v290 = vunpack.c.l.b16 %v258
      %v291 = vunpack.c.l.b16 %v259
      %v292 = vunpack.c.l.b16 %v260
      %v293 = vunpack.c.l.b16 %v261
      %v294 = vunpack.c.l.b16 %v262
      %v295 = vunpack.c.l.b16 %v263
      %v296 = vunpack.c.l.b16 %v264
      %v297 = vunpack.c.l.b16 %v265
      %v298 = vunpack.c.l.b16 %v266
      %v299 = vunpack.c.l.b16 %v267
      %v300 = vpack.c.b16 %v285, %v284
      %v301 = vpack.c.b16 %v287, %v286
      %v302 = vpack.c.b16 %v289, %v288
      %v303 = vpack.c.b16 %v291, %v290
      %v304 = vpack.c.b16 %v293, %v292
      %v305 = vpack.c.b16 %v295, %v294
      %v306 = vpack.c.b16 %v297, %v296
      %v307 = vpack.c.b16 %v299, %v298
      %316 = vmatprep.subr.bf16.mxu0 0
      %317 = vmatpush1.bf16.msra.mxu0 %v307
      %318 = vmatprep.subr.bf16.mxu0 0
      %319 = vmatpush1.bf16.msra.mxu0 %v306
      %320 = vmatprep.subr.bf16.mxu0 0
      %321 = vmatpush1.bf16.msra.mxu0 %v305
      %322 = vmatprep.subr.bf16.mxu0 0
      %323 = vmatpush1.bf16.msra.mxu0 %v304
      %324 = vmatprep.subr.bf16.mxu0 0
      %325 = vmatpush1.bf16.msra.mxu0 %v303
      %326 = vmatprep.subr.bf16.mxu0 0
      %327 = vmatpush1.bf16.msra.mxu0 %v302
      %328 = vmatprep.subr.bf16.mxu0 0
      %329 = vmatpush1.bf16.msra.mxu0 %v301
      %330 = vmatprep.subr.bf16.mxu0 0
      %331 = vmatpush1.bf16.msra.mxu0 %v300
      %332 = vmatprep.subr.bf16.mxu0 0
      %333 = vmatpush2.bf16.msra.mxu0 0
      %334 = vmatprep.subr.bf16.mxu0 0
      %335 = vmatpush2.bf16.msra.mxu0 0
      %336 = vmatprep.subr.bf16.mxu0 0
      %337 = vmatpush2.bf16.msra.mxu0 0
      %338 = vmatprep.subr.bf16.mxu0 0
      %339 = vmatpush2.bf16.msra.mxu0 0
      %340 = vmatprep.subr.bf16.mxu0 0
      %341 = vmatpush2.bf16.msra.mxu0 0
      %342 = vmatprep.subr.bf16.mxu0 0
      %343 = vmatpush2.bf16.msra.mxu0 0
      %344 = vmatprep.subr.bf16.mxu0 0
      %345 = vmatpush2.bf16.msra.mxu0 0
      %346 = vmatprep.subr.bf16.mxu0 0
      %347 = vmatpush2.bf16.msra.mxu0 0
      %348 = vmatprep.mubr.bf16.mxu0 0
      %349 = vmatmul.mubr.bf16.gmra.mxu0 %v235
      %v350 = vpop.f32.mrf.mxu0
      %v351 = vadd.f32 0.0, %v350
      %v352 = vpop.f32.mrf.mxu0
      %v353 = vpop.f32.mrf.mxu0
      %v354 = vadd.f32 0.0, %v353
      %v355 = vpop.f32.mrf.mxu0
      %356 = vdwg.mxu0
      %v373 = vunpack.c.l.b16 %v236
      %v374 = vunpack.c.l.b16 %v237
      %v375 = vunpack.c.l.b16 %v238
      %v376 = vunpack.c.l.b16 %v239
      %v377 = vunpack.c.l.b16 %v240
      %v378 = vunpack.c.l.b16 %v241
      %v379 = vunpack.c.l.b16 %v242
      %v380 = vunpack.c.l.b16 %v243
      %v381 = vunpack.c.l.b16 %v244
      %v382 = vunpack.c.l.b16 %v245
      %v383 = vunpack.c.l.b16 %v246
      %v384 = vunpack.c.l.b16 %v247
      %v385 = vunpack.c.l.b16 %v248
      %v386 = vunpack.c.l.b16 %v249
      %v387 = vunpack.c.l.b16 %v250
      %v388 = vunpack.c.l.b16 %v251
      %v389 = vpack.c.b16 %v374, %v373
      %v390 = vpack.c.b16 %v376, %v375
      %v391 = vpack.c.b16 %v378, %v377
      %v392 = vpack.c.b16 %v380, %v379
      %v393 = vpack.c.b16 %v382, %v381
      %v394 = vpack.c.b16 %v384, %v383
      %v395 = vpack.c.b16 %v386, %v385
      %v396 = vpack.c.b16 %v388, %v387
      %405 = vmatprep.subr.bf16.mxu0 0
      %406 = vmatpush1.bf16.msra.mxu0 %v396
      %407 = vmatprep.subr.bf16.mxu0 0
      %408 = vmatpush1.bf16.msra.mxu0 %v395
      %409 = vmatprep.subr.bf16.mxu0 0
      %410 = vmatpush1.bf16.msra.mxu0 %v394
      %411 = vmatprep.subr.bf16.mxu0 0
      %412 = vmatpush1.bf16.msra.mxu0 %v393
      %413 = vmatprep.subr.bf16.mxu0 0
      %414 = vmatpush1.bf16.msra.mxu0 %v392
      %415 = vmatprep.subr.bf16.mxu0 0
      %416 = vmatpush1.bf16.msra.mxu0 %v391
      %417 = vmatprep.subr.bf16.mxu0 0
      %418 = vmatpush1.bf16.msra.mxu0 %v390
      %419 = vmatprep.subr.bf16.mxu0 0
      %420 = vmatpush1.bf16.msra.mxu0 %v389
      %421 = vmatprep.subr.bf16.mxu0 0
      %422 = vmatpush2.bf16.msra.mxu0 0
      %423 = vmatprep.subr.bf16.mxu0 0
      %424 = vmatpush2.bf16.msra.mxu0 0
      %425 = vmatprep.subr.bf16.mxu0 0
      %426 = vmatpush2.bf16.msra.mxu0 0
      %427 = vmatprep.subr.bf16.mxu0 0
      %428 = vmatpush2.bf16.msra.mxu0 0
      %429 = vmatprep.subr.bf16.mxu0 0
      %430 = vmatpush2.bf16.msra.mxu0 0
      %431 = vmatprep.subr.bf16.mxu0 0
      %432 = vmatpush2.bf16.msra.mxu0 0
      %433 = vmatprep.subr.bf16.mxu0 0
      %434 = vmatpush2.bf16.msra.mxu0 0
      %435 = vmatprep.subr.bf16.mxu0 0
      %436 = vmatpush2.bf16.msra.mxu0 0
      %437 = vmatprep.mubr.bf16.mxu0 0
      %438 = vmatmul.mubr.bf16.gmra.mxu0 %v232
      %v439 = vpop.f32.mrf.mxu0
      %v440 = vadd.f32 %v351, %v439
      %v441 = vpop.f32.mrf.mxu0
      %v442 = vpop.f32.mrf.mxu0
      %v443 = vadd.f32 %v354, %v442
      %v444 = vpop.f32.mrf.mxu0
      %445 = vdwg.mxu0
      %v446 = vld [vmem:[%s4] sm:$0x1]
      %v448 = vlaneseq
      %v449 = vshrl.u32 %v448, 7
      %v450 = vsub.s32 0, %v449
      %v451 = vrot.slane %v446, %v450
      %v453 = vadd.f32 %v440, %v451
      %v454 = vadd.f32 %v443, %v451
      %v455 = vld [vmem:[#allocation3] sm:$0xff]
      %v456 = vld [vmem:[#allocation3 + $0x8] sm:$0xff]
      %v457 = vld [vmem:[%s5] sm:$0x1]
      %459 = vset.pattern.permute.xlu0 0
      %460 = vperm.xlu0 %459, %v455
      %v461 = vpop.permute.xlu0 %460
      %464 = vset.pattern.permute.xlu0 0
      %465 = vperm.xlu0 %464, %v456
      %v466 = vpop.permute.xlu0 %465
      %v469 = vlaneseq
      %v470 = vshrl.u32 %v469, 7
      %v471 = vsub.s32 0, %v470
      %v472 = vrot.slane %v457, %v471
      %v474 = vmul.f32 %v461, %v472
      %v475 = vmul.f32 %v466, %v472
      %v476 = vadd.f32 %v453, %v474
      %v477 = vadd.f32 %v454, %v475
      %vm478 = vcmp.gt.f32.partialorder %v476, 0.0
      %vm479 = vcmp.gt.f32.partialorder %v477, 0.0
      %v480 = vmul.f32 %v476, 0.2
      %v481 = vmul.f32 %v477, 0.2
      %v482 = vsel %vm478, %v476, %v480
      %v483 = vsel %vm479, %v477, %v481
      %v484 = vmul.f32 %v482, %v482
      %v485 = vmul.f32 %v483, %v483
      %486 = vadd.xlane.f32.xlu0 %v484
      %v487 = vpop.xlane.xlu0 %486
      %488 = vadd.xlane.f32.xlu0 %v485
      %v489 = vpop.xlane.xlu0 %488
      %v490 = vmax.f32 %v487, 1e-24
      %v491 = vmax.f32 %v489, 1e-24
      %v492 = vrsqrt.pop %v490
      %v493 = vrsqrt.pop %v491
      %v494 = vmul.f32 %v482, %v492
      %v495 = vmul.f32 %v483, %v493
      %496 = vst [vmem:[#allocation12] sm:$0xff] %v494
      %497 = vst [vmem:[#allocation12 + $0x8] sm:$0xff] %v495
    $region49: #{tpu_custom_call.1} parent=1 // pred_fallthru
      _
    // Predicated region
    $region50: #{tpu_custom_call.1} parent=1 // pred_check
      _
    $region51: #{tpu_custom_call.1} parent=1 // pred_check_branch
      %499 = sbr.rel (0) target = $region53
    $region52: #{tpu_custom_call.1} parent=1 // pred_region
      %s501 = ssub.s32 256, 256
      %502 = vsyncadd [#allocation6], %s501
      %s503 = sshll.u32 [#allocation12], 4
      %s504 = int_to_ptr.vmem [resolvable:$true] %s503
      %509 = dma.vmem_to_hbm [thread:$0]  %s504, 256, %s6, [#allocation6], 128, 128, 8
    $region53: #{tpu_custom_call.1} parent=1 // pred_fallthru
      _
    // Predicated region
    $region54: #{tpu_custom_call.1} parent=1 // pred_check
      _
    $region55: #{tpu_custom_call.1} parent=1 // pred_check_branch
      %511 = sbr.rel (0) target = $region57
    $region56: #{tpu_custom_call.1} parent=1 // pred_region
      %512 = dma.done [#allocation6], 256
    $region57: #{tpu_custom_call.1} parent=1 // pred_fallthru
      _
    %513 = vsyncpa [#allocation5], 1
    %514 = vsyncpa [#allocation8], 1
    %515 = vsyncpa [#allocation11], 1
    %516 = vsyncpa [#allocation6], 1

</llo_original>
